<compile_context>
chip_gen: v7x
topology: tpu7x:2x2x1
jax: 0.10.0
libtpu: 0.0.40
codegen_flags: <defaults>
</compile_context>

<pallas_src>
import functools

import jax
import jax.numpy as jnp
from jax import lax
from jax.experimental import pallas as pl
from jax.experimental.pallas import tpu as pltpu

# softplus(_PAD_LOGIT) underflows to exactly 0.0 in f32, so padded cells add 0.
_PAD_LOGIT = -1.0e4


def _bce_kernel(pred_ref, tgt_ref, out_ref, *, inv_count):
    i = pl.program_id(0)

    @pl.when(i == 0)
    def _():
        out_ref[...] = jnp.zeros_like(out_ref)

    x = pred_ref[...].astype(jnp.float32)          # (bt, n_pad)
    tgt = tgt_ref[...]                             # (bt, 1) int32; padded rows = -1

    bt, n_pad = x.shape
    col = lax.broadcasted_iota(jnp.int32, (bt, n_pad), 1)

    # Numerically-stable BCE-with-logits against a one-hot target:
    #   loss = softplus(x) - x * onehot
    softplus = jnp.maximum(x, 0.0) + jnp.log(1.0 + jnp.exp(-jnp.abs(x)))
    x_at_target = jnp.where(col == tgt, x, 0.0)    # x * onehot (no scatter needed)

    out_ref[...] += jnp.sum(softplus - x_at_target)

    @pl.when(i == pl.num_programs(0) - 1)
    def _():
        out_ref[...] = out_ref[...] * inv_count


def bce_loss(predict, target, *, b_tile=256):
    """predict: (bs, n) float logits, target: (bs,) int class indices -> scalar."""
    bs, n = predict.shape

    # Lane-dense last dim (multiple of 128).
    n_pad = max(128, pl.cdiv(n, 128) * 128)

    # Sublane-dense batch tile (multiple of 8), capped so one input block is <= ~4 MiB.
    bytes_per_row = n_pad * jnp.dtype(predict.dtype).itemsize
    max_bt = max(8, ((4 << 20) // bytes_per_row) // 8 * 8)
    bt = max(8, min(b_tile, max_bt, pl.cdiv(bs, 8) * 8))
    bs_pad = pl.cdiv(bs, bt) * bt

    x = predict
    if bs_pad != bs or n_pad != n:
        # Pad with a large-negative logit -> padded cells contribute exactly 0.
        x = jnp.pad(predict, ((0, bs_pad - bs), (0, n_pad - n)),
                    constant_values=_PAD_LOGIT)

    t = target.astype(jnp.int32).reshape(bs, 1)
    if bs_pad != bs:
        # Padded rows get target -1: no column ever matches.
        t = jnp.pad(t, ((0, bs_pad - bs), (0, 0)), constant_values=-1)

    grid = (bs_pad // bt,)

    out = pl.pallas_call(
        functools.partial(_bce_kernel, inv_count=1.0 / float(bs * n)),
        out_shape=jax.ShapeDtypeStruct((1, 1), jnp.float32),
        grid_spec=pltpu.PrefetchScalarGridSpec(
            num_scalar_prefetch=0,
            grid=grid,
            in_specs=[
                pl.BlockSpec((bt, n_pad), lambda i: (i, 0)),
                pl.BlockSpec((bt, 1), lambda i: (i, 0)),
            ],
            out_specs=pl.BlockSpec((1, 1), lambda i: (0, 0)),
        ),
        compiler_params=pltpu.CompilerParams(
            # Output block accumulates across the batch-tile axis -> reduction axis.
            dimension_semantics=("arbitrary",)),
    )(x, t)
    return out[0, 0]


def bce_loss_ref(predict, target):
    n = predict.shape[1]
    x = predict.astype(jnp.float32)
    y = jax.nn.one_hot(target, n, dtype=jnp.float32)
    loss = jnp.maximum(x, 0.0) - x * y + jnp.log(1.0 + jnp.exp(-jnp.abs(x)))
    return jnp.mean(loss)


if __name__ == "__main__":
    key = jax.random.PRNGKey(0)
    bs, n = 10, 40                                  # non-multiples: exercise padding path
    k1, k2 = jax.random.split(key)
    predict = jax.random.normal(k1, (bs, n), dtype=jnp.float32)
    target = jax.random.randint(k2, (bs,), 0, n, dtype=jnp.int32)

    # b_tile=8 -> bs_pad=16, two grid steps: exercises init/accumulate/finalize.
    out = bce_loss(predict, target, b_tile=8)
    out = jax.block_until_ready(out)

    ref = bce_loss_ref(predict, target)
    assert out.shape == ()
    assert jnp.allclose(out, ref, rtol=1e-5, atol=1e-5), (out, ref)

    print("KERNEL_OK")
</pallas_src>

<mosaic_0001>
module attributes {stable_mosaic.version = 11 : i64} {
  func.func @_bce_kernel(%arg0: i32, %arg1: memref<8x128xf32, #tpu.memory_space<vmem>>, %arg2: memref<8x1xi32, #tpu.memory_space<vmem>>, %arg3: memref<1x1xf32, #tpu.memory_space<vmem>>) attributes {dimension_semantics = [#tpu.dimension_semantics<arbitrary>], iteration_bounds = array<i64: 2>, scalar_prefetch = 0 : i64, scratch_operands = 0 : i64, tpu.core_type = #tpu.core_type<tc>, window_params = [{transform_indices = @transform_0, window_bounds = array<i64: 8, 128>}, {transform_indices = @transform_1, window_bounds = array<i64: 8, 1>}, {pipeline_mode = #tpu.pipeline_mode<synchronous>, transform_indices = @transform_2, window_bounds = array<i64: 1, 1>}]} {
    %c0_i32 = arith.constant 0 : i32
    %0 = arith.cmpi eq, %arg0, %c0_i32 : i32
    %1 = arith.extui %0 : i1 to i32
    %c0_i32_0 = arith.constant 0 : i32
    %2 = arith.cmpi ne, %1, %c0_i32_0 : i32
    scf.if %2 {
      %cst_13 = arith.constant 0.000000e+00 : f32
      %32 = vector.broadcast %cst_13 : f32 to vector<1x1xf32>
      %c0_14 = arith.constant 0 : index
      %c0_15 = arith.constant 0 : index
      %33 = vector.load %arg3[%c0_14, %c0_15] : memref<1x1xf32, #tpu.memory_space<vmem>>, vector<1x1xf32>
      tpu.vector_store %arg3[%c0_14, %c0_15], %32 {strides = array<i32>} : memref<1x1xf32, #tpu.memory_space<vmem>>, vector<1x1xf32>,
    } else {
    }
    %c0 = arith.constant 0 : index
    %c0_1 = arith.constant 0 : index
    %3 = vector.load %arg1[%c0, %c0_1] : memref<8x128xf32, #tpu.memory_space<vmem>>, vector<8x128xf32>
    %c0_2 = arith.constant 0 : index
    %c0_3 = arith.constant 0 : index
    %4 = vector.load %arg2[%c0_2, %c0_3] : memref<8x1xi32, #tpu.memory_space<vmem>>, vector<8x1xi32>
    %5 = tpu.iota {dimensions = array<i32: 1>} : vector<8x128xi32>
    %cst = arith.constant 0.000000e+00 : f32
    %6 = vector.broadcast %cst : f32 to vector<8x128xf32>
    %7 = arith.maximumf %3, %6 : vector<8x128xf32>
    %8 = math.absf %3 : vector<8x128xf32>
    %cst_4 = arith.constant 0.000000e+00 : f32
    %9 = vector.broadcast %cst_4 : f32 to vector<8x128xf32>
    %10 = arith.subf %9, %8 : vector<8x128xf32>
    %11 = math.exp %10 : vector<8x128xf32>
    %cst_5 = arith.constant 1.000000e+00 : f32
    %12 = vector.broadcast %cst_5 : f32 to vector<8x128xf32>
    %13 = arith.addf %12, %11 : vector<8x128xf32>
    %14 = math.log %13 : vector<8x128xf32>
    %15 = arith.addf %7, %14 : vector<8x128xf32>
    %16 = vector.broadcast %4 : vector<8x1xi32> to vector<8x128xi32>
    %17 = arith.cmpi eq, %5, %16 : vector<8x128xi32>
    %cst_6 = arith.constant 0.000000e+00 : f32
    %18 = vector.broadcast %cst_6 : f32 to vector<8x128xf32>
    %19 = arith.select %17, %3, %18 : vector<8x128xi1>, vector<8x128xf32>
    %c0_7 = arith.constant 0 : index
    %c0_8 = arith.constant 0 : index
    %20 = vector.load %arg3[%c0_7, %c0_8] : memref<1x1xf32, #tpu.memory_space<vmem>>, vector<1x1xf32>
    %21 = arith.subf %15, %19 : vector<8x128xf32>
    %22 = vector.shape_cast %21 : vector<8x128xf32> to vector<1x8x128xf32>
    %cst_9 = arith.constant dense<0.000000e+00> : vector<1xf32>
    %23 = vector.multi_reduction <add>, %22, %cst_9 [1, 2] : vector<1x8x128xf32> to vector<1xf32>
    %24 = vector.shape_cast %23 : vector<1xf32> to vector<1x1x1xf32>
    %25 = vector.extract %24[0, 0, 0] : f32 from vector<1x1x1xf32>
    %26 = vector.broadcast %25 : f32 to vector<1x1xf32>
    %27 = arith.addf %20, %26 : vector<1x1xf32>
    %c0_10 = arith.constant 0 : index
    %c0_11 = arith.constant 0 : index
    %28 = vector.load %arg3[%c0_10, %c0_11] : memref<1x1xf32, #tpu.memory_space<vmem>>, vector<1x1xf32>
    tpu.vector_store %arg3[%c0_10, %c0_11], %27 {strides = array<i32>} : memref<1x1xf32, #tpu.memory_space<vmem>>, vector<1x1xf32>,
    %c1_i32 = arith.constant 1 : i32
    %29 = arith.cmpi eq, %arg0, %c1_i32 : i32
    %30 = arith.extui %29 : i1 to i32
    %c0_i32_12 = arith.constant 0 : i32
    %31 = arith.cmpi ne, %30, %c0_i32_12 : i32
    scf.if %31 {
      %c0_13 = arith.constant 0 : index
      %c0_14 = arith.constant 0 : index
      %32 = vector.load %arg3[%c0_13, %c0_14] : memref<1x1xf32, #tpu.memory_space<vmem>>, vector<1x1xf32>
      %cst_15 = arith.constant 2.500000e-03 : f32
      %33 = vector.broadcast %cst_15 : f32 to vector<1x1xf32>
      %34 = arith.mulf %32, %33 : vector<1x1xf32>
      %c0_16 = arith.constant 0 : index
      %c0_17 = arith.constant 0 : index
      %35 = vector.load %arg3[%c0_16, %c0_17] : memref<1x1xf32, #tpu.memory_space<vmem>>, vector<1x1xf32>
      tpu.vector_store %arg3[%c0_16, %c0_17], %34 {strides = array<i32>} : memref<1x1xf32, #tpu.memory_space<vmem>>, vector<1x1xf32>,
    } else {
    }
    return
  }
  func.func @transform_0(%arg0: i32) -> (i32, i32) {
    %c0_i32 = arith.constant 0 : i32
    %c0_i32_0 = arith.constant 0 : i32
    return %arg0, %c0_i32 : i32, i32
  }
  func.func @transform_1(%arg0: i32) -> (i32, i32) {
    %c0_i32 = arith.constant 0 : i32
    %c0_i32_0 = arith.constant 0 : i32
    return %arg0, %c0_i32 : i32, i32
  }
  func.func @transform_2(%arg0: i32) -> (i32, i32) {
    %c0_i32 = arith.constant 0 : i32
    %c0_i32_0 = arith.constant 0 : i32
    %c0_i32_1 = arith.constant 0 : i32
    return %c0_i32, %c0_i32_0 : i32, i32
  }
}

</mosaic_0001>

<llo_original>
// kernel: tpu_custom_call.1
$region0: #{tpu_custom_call.1}
  #allocation0 [shape = 'u32[]', space=smem, size = 0x4, offset = 0x4, fixed_abs, tag = 'smem constant byte address 0x4 - core index']
  #allocation1 [shape = 'u32[144,128]{1,0:T(1,128)}', space=vmem, size = 0x12000, scoped, tag = 'internal scratch']
  %s0 = inlined_call_operand.vmem [shape: f32[16,128], index: 0, kind: input, shape index: {}]
  %s1 = inlined_call_operand.vmem [shape: s32[16,1], index: 1, kind: input, shape index: {}]
  %s2 = inlined_call_operand.hbm [shape: f32[1,1], index: 2, kind: output, shape index: {}]
  %s3 = sld [smem:[#allocation0]]
  $region49: #{tpu_custom_call.1} parent=0
    _
  %s5 = ssub.s32 1, %s3
  %s6 = scalar_select 0, %s5, %s3
  $region1: #{tpu_custom_call.1} parent=0
    #allocation2 [shape = 'u8[512]{0}', space=vmem, size = 0x400, scoped, tag = 'output window, operand 0, single buffered']
    #allocation3 [shape = 's32[2]{0}', space=sflag, size = 0x8, scoped, tag = 'scoped memory for tpu_custom_call.1']
    %7 = vsyncpa [#allocation3], 0
    loop: start=0, step=1, limit=4
    $region2: #{tpu_custom_call.1} parent=1 // loop_pre_header
      _
    $region3: #{tpu_custom_call.1} parent=1 // loop_header
      %s9 = sphi 0, %s13
      %p10 = scmp.ge.s32.totalorder %s9, 4
      %s19 = sphi 0, %s21
      %s22 = sphi 0, %s19
      %s23 = sphi 0, %s22
      %s39 = sphi 0, %s23
      %s45 = sphi 0, %s47
      %s48 = sphi 0, %s45
      %s49 = sphi 0, %s48
      %s65 = sphi 0, %s49
      %s69 = sphi 0, %s69
      %s71 = sphi 0, %s69
      %s72 = sphi 0, %s71
      %s86 = sphi 0, %s72
    $region4: #{tpu_custom_call.1} parent=1 // loop_header_branch
      %12 = sbr.rel (%p10) target = $region8
    $region5: #{tpu_custom_call.1} parent=1 // loop_body
      %s14 = ssub.s32 %s9, 1
      %s15 = ssub.s32 %s9, 2
      %s16 = sadd.s32 %s9, 1
      %s17 = ssub.s32 %s9, %s16
      %p18 = scmp.eq.s32.totalorder %s17, 0
      %s20 = sadd.s32 %s19, 1
      %s21 = scalar_select %p18, %s19, %s20
      %p24 = pneg %p18
      %p25 = scmp.eq.s32.totalorder %s9, 1
      %p26 = por %p24, %p25
      %p27 = scmp.ne.s32.totalorder %s19, %s22
      %p28 = scmp.eq.s32.totalorder %s9, 0
      %p29 = por %p27, %p28
      %p30 = scmp.ne.s32.totalorder %s19, %s22
      %p31 = scmp.eq.s32.totalorder %s14, 1
      %p32 = por %p30, %p31
      %p33 = scmp.ne.s32.totalorder %s22, %s23
      %p34 = scmp.eq.s32.totalorder %s14, 0
      %p35 = por %p33, %p34
      %p36 = scmp.ne.s32.totalorder %s22, %s23
      %p37 = scmp.eq.s32.totalorder %s15, 1
      %p38 = por %p36, %p37
      %p40 = scmp.ne.s32.totalorder %s23, %s39
      %p41 = scmp.eq.s32.totalorder %s15, 0
      %p42 = por %p40, %p41
      %s43 = ssub.s32 %s9, %s16
      %p44 = scmp.eq.s32.totalorder %s43, 0
      %s46 = sadd.s32 %s45, 1
      %s47 = scalar_select %p44, %s45, %s46
      %p50 = pneg %p44
      %p51 = scmp.eq.s32.totalorder %s9, 1
      %p52 = por %p50, %p51
      %p53 = scmp.ne.s32.totalorder %s45, %s48
      %p54 = scmp.eq.s32.totalorder %s9, 0
      %p55 = por %p53, %p54
      %p56 = scmp.ne.s32.totalorder %s45, %s48
      %p57 = scmp.eq.s32.totalorder %s14, 1
      %p58 = por %p56, %p57
      %p59 = scmp.ne.s32.totalorder %s48, %s49
      %p60 = scmp.eq.s32.totalorder %s14, 0
      %p61 = por %p59, %p60
      %p62 = scmp.ne.s32.totalorder %s48, %s49
      %p63 = scmp.eq.s32.totalorder %s15, 1
      %p64 = por %p62, %p63
      %p66 = scmp.ne.s32.totalorder %s49, %s65
      %p67 = scmp.eq.s32.totalorder %s15, 0
      %p68 = por %p66, %p67
      %s70 = sadd.s32 %s69, 1
      %p73 = scmp.eq.s32.totalorder %s9, 1
      %p74 = scmp.ne.s32.totalorder %s69, %s71
      %p75 = scmp.eq.s32.totalorder %s9, 0
      %p76 = por %p74, %p75
      %p77 = scmp.ne.s32.totalorder %s69, %s71
      %p78 = scmp.eq.s32.totalorder %s14, 1
      %p79 = por %p77, %p78
      %p80 = scmp.ne.s32.totalorder %s71, %s72
      %p81 = scmp.eq.s32.totalorder %s14, 0
      %p82 = por %p80, %p81
      %p83 = scmp.ne.s32.totalorder %s71, %s72
      %p84 = scmp.eq.s32.totalorder %s15, 1
      %p85 = por %p83, %p84
      %p87 = scmp.ne.s32.totalorder %s72, %s86
      %p88 = scmp.eq.s32.totalorder %s15, 0
      %p89 = por %p87, %p88
      %p90 = scmp.le.s32.totalorder 1, %s9
      %p91 = scmp.lt.s32.totalorder %s9, 3
      %p92 = pnand %p90, %p91
      %p93 = pneg %p92
      // Predicated region
      $region9: #{tpu_custom_call.1} parent=5 // pred_check
        _
      $region10: #{tpu_custom_call.1} parent=5 // pred_check_branch
        %95 = sbr.rel (%p92) target = $region12
      $region11: #{tpu_custom_call.1} parent=5 // pred_region
        %s96 = ssub.s32 %s9, 1
      $region12: #{tpu_custom_call.1} parent=5 // pred_fallthru
        _
      %p97 = scmp.lt.s32.totalorder %s9, 2
      // Predicated region
      $region13: #{tpu_custom_call.1} parent=5 // pred_check
        %p98 = pneg %p97
      $region14: #{tpu_custom_call.1} parent=5 // pred_check_branch
        %100 = sbr.rel (%p98) target = $region16
      $region15: #{tpu_custom_call.1} parent=5 // pred_region
        // Predicated region
        $region17: #{tpu_custom_call.1} parent=15 // pred_check
          %p101 = pneg %p29
        $region18: #{tpu_custom_call.1} parent=15 // pred_check_branch
          %103 = sbr.rel (%p101) target = $region20
        $region19: #{tpu_custom_call.1} parent=15 // pred_region
          %p104 = scmp.lt.s32.totalorder %s9, 1
          %s105 = scalar_select %p104, %s9, 1
          %s106 = smul.addr %s105, 8
          %s107 = scalar_lea.vmem %s0, %s106
        $region20: #{tpu_custom_call.1} parent=15 // pred_fallthru
          _
        // Predicated region
        $region21: #{tpu_custom_call.1} parent=15 // pred_check
          %p108 = pneg %p55
        $region22: #{tpu_custom_call.1} parent=15 // pred_check_branch
          %110 = sbr.rel (%p108) target = $region24
        $region23: #{tpu_custom_call.1} parent=15 // pred_region
          %p111 = scmp.lt.s32.totalorder %s9, 1
          %s112 = scalar_select %p111, %s9, 1
          %s113 = smul.addr %s112, 8
          %s114 = scalar_lea.vmem %s1, %s113
        $region24: #{tpu_custom_call.1} parent=15 // pred_fallthru
          _
      $region16: #{tpu_custom_call.1} parent=5 // pred_fallthru
        _
      %p115 = scmp.le.s32.totalorder 1, %s9
      %p116 = scmp.lt.s32.totalorder %s9, 3
      %p117 = pnand %p115, %p116
      %p118 = pneg %p117
      // Predicated region
      $region25: #{tpu_custom_call.1} parent=5 // pred_check
        _
      $region26: #{tpu_custom_call.1} parent=5 // pred_check_branch
        %120 = sbr.rel (%p117) target = $region28
      $region27: #{tpu_custom_call.1} parent=5 // pred_region
        %s121 = ssub.s32 %s9, 1
        %p122 = scmp.lt.s32.totalorder %s14, 1
        %s123 = scalar_select %p122, %s14, 1
        %s124 = smul.addr %s123, 8
        %s125 = scalar_lea.vmem %s0, %s124
        %p126 = pneg %p35
        %p127 = pneg %p32
        %p128 = scmp.lt.s32.totalorder %s14, 1
        %s129 = scalar_select %p128, %s14, 1
        %s130 = smul.addr %s129, 8
        %s131 = scalar_lea.vmem %s1, %s130
        %p132 = pneg %p61
        %p133 = pneg %p58
        %p134 = pneg %p82
        %p135 = pneg %p79
        %p136 = scmp.lt.s32.totalorder %s14, 1
        %s137 = scalar_select %p136, %s14, 1
        %s138 = smul.addr %s137, 8
        %s139 = scalar_lea.vmem %s0, %s138
        %p140 = scmp.lt.s32.totalorder %s14, 1
        %s141 = scalar_select %p140, %s14, 1
        %s142 = smul.addr %s141, 8
        %s143 = scalar_lea.vmem %s1, %s142
        %p144 = scmp.eq.s32.totalorder %s14, 0
        // Predicated region
        $region29: #{tpu_custom_call.1} parent=27 // pred_check
          %p145 = pneg %p144
        $region30: #{tpu_custom_call.1} parent=27 // pred_check_branch
          %147 = sbr.rel (%p145) target = $region32
        $region31: #{tpu_custom_call.1} parent=27 // pred_region
          %vm148 = vcmask 0
          %149 = vst.msk [vmem:[#allocation2] sm:$0x1] %vm148, 0.0
        $region32: #{tpu_custom_call.1} parent=27 // pred_fallthru
          _
        %v150 = vld [vmem:[%s139] sm:$0xff]
        %v151 = vld [vmem:[%s143] sm:$0xff]
        %v152 = vlaneseq
        %v153 = vand.u32 %v152, 127
        %v154 = vmax.f32 %v150, 0.0
        %v155 = vand.u32 2147483647, %v150
        %v156 = vsub.f32 0.0, %v155
        %v157 = vmul.f32 %v156, 1.442695
        %v158 = vpow.pop %v157
        %v159 = vadd.f32 %v158, 1.0
        %v160 = vlog2.pop %v159
        %v161 = vmul.f32 %v160, 0.6931472
        %v162 = vadd.f32 %v154, %v161
        %163 = vset.pattern.permute.xlu0 0
        %164 = vperm.xlu0 %163, %v151
        %v165 = vpop.permute.xlu0 %164
        %vm166 = vcmp.eq.s32.totalorder %v153, %v165
        %v167 = vsel %vm166, %v150, 0.0
        %v168 = vld [vmem:[#allocation2] sm:$0x1]
        %v169 = vsub.f32 %v162, %v167
        %170 = vadd.xlane.f32.xlu0 %v169
        %v171 = vpop.xlane.xlu0 %170
        %v172 = vrot.slane %v171, 4
        %v173 = vadd.f32 %v171, %v172
        %v174 = vrot.slane %v173, 2
        %v175 = vadd.f32 %v173, %v174
        %v176 = vrot.slane %v175, 1
        %v177 = vadd.f32 %v175, %v176
        %s178 = vtos %v177
        %v179 = vstv %s178
        %v180 = vadd.f32 %v168, %v179
        %vm181 = vcmask 0
        %182 = vst.msk [vmem:[#allocation2] sm:$0x1] %vm181, %v180
        %p183 = scmp.eq.s32.totalorder %s14, 1
        // Predicated region
        $region33: #{tpu_custom_call.1} parent=27 // pred_check
          %p184 = pneg %p183
        $region34: #{tpu_custom_call.1} parent=27 // pred_check_branch
          %186 = sbr.rel (%p184) target = $region36
        $region35: #{tpu_custom_call.1} parent=27 // pred_region
          %v187 = vld [vmem:[#allocation2] sm:$0x1]
          %v188 = vmul.f32 %v187, 0.0025
          %189 = vst.msk [vmem:[#allocation2] sm:$0x1] %vm181, %v188
        $region36: #{tpu_custom_call.1} parent=27 // pred_fallthru
          _
        // Predicated region
        $region37: #{tpu_custom_call.1} parent=27 // pred_check
          %p190 = pneg %p79
        $region38: #{tpu_custom_call.1} parent=27 // pred_check_branch
          %192 = sbr.rel (%p190) target = $region40
        $region39: #{tpu_custom_call.1} parent=27 // pred_region
          %s194 = ssub.s32 16, 16
          %195 = vsyncadd [#allocation3], %s194
          %s197 = sshll.u32 [#allocation2], 4
          %s198 = int_to_ptr.vmem [resolvable:$true] %s197
          %200 = dma.vmem_to_hbm [thread:$0]  %s198, 16, %s2, [#allocation3]
        $region40: #{tpu_custom_call.1} parent=27 // pred_fallthru
          _
        // Predicated region
        $region41: #{tpu_custom_call.1} parent=27 // pred_check
          %p201 = pneg %p79
        $region42: #{tpu_custom_call.1} parent=27 // pred_check_branch
          %203 = sbr.rel (%p201) target = $region44
        $region43: #{tpu_custom_call.1} parent=27 // pred_region
          %204 = dma.done [#allocation3], 16
        $region44: #{tpu_custom_call.1} parent=27 // pred_fallthru
          _
      $region28: #{tpu_custom_call.1} parent=5 // pred_fallthru
        _
      %p205 = scmp.le.s32.totalorder 2, %s9
      // Predicated region
      $region45: #{tpu_custom_call.1} parent=5 // pred_check
        %p206 = pneg %p205
      $region46: #{tpu_custom_call.1} parent=5 // pred_check_branch
        %208 = sbr.rel (%p206) target = $region48
      $region47: #{tpu_custom_call.1} parent=5 // pred_region
        %s209 = ssub.s32 %s9, 2
      $region48: #{tpu_custom_call.1} parent=5 // pred_fallthru
        _
    $region6: #{tpu_custom_call.1} parent=1 // loop_footer
      %s13 = sadd.s32 1, %s9
    $region7: #{tpu_custom_call.1} parent=1 // loop_footer_branch
      %8 = sbr.rel target = $region3
    $region8: #{tpu_custom_call.1} parent=1 // loop_exit
      _
    %210 = vsyncpa [#allocation3], 1
    %s211 = scalar_lea.sflag [#allocation3], 1
    %212 = vsyncpa %s211, 1

</llo_original>
